<compile_context>
chip_gen: v6e
topology: v6e:2x2x1
jax: 0.10.0
libtpu: 0.0.40
codegen_flags: <defaults>
</compile_context>

<pallas_src>
import functools

import jax
import jax.numpy as jnp
from jax import lax
from jax.experimental import pallas as pl
from jax.experimental.pallas import tpu as pltpu

SIZE = 9            # sudoku grid size -> spatial extent of the 3D volume
DECODED_DIM = 32    # TODO(synk): settings['sharp_decoded_emb_dim'] unavailable; fixed to 32.
PAD = 2             # max conv padding across the three layers (5x5x5 conv)
CANVAS = SIZE + 2 * PAD          # 13 : one shared zero-padded canvas for all layers
SC = CANVAS ** 3                 # 2197 flattened canvas positions
SC_PAD = 2304                    # 18 * 128 -> lane-dense spatial axis
K1_TAPS = 27                     # layer-1 3x3x3 taps
K1_PAD = 32                      # padded to a sublane-friendly contraction dim


# ---------------------------------------------------------------------------
# Roll-convention probe: pltpu.roll is documented to match jnp.roll, but pin
# the hardware rotate direction empirically (1-vreg kernel, ~1s compile) so the
# static shift tables below always carry the correct sign.
# ---------------------------------------------------------------------------
def _roll_probe_kernel(x_ref, o_ref):
    o_ref[...] = pltpu.roll(x_ref[...], shift=1, axis=1)


@functools.lru_cache(maxsize=None)
def _roll_matches_jnp():
    x = jnp.tile(jnp.arange(256, dtype=jnp.float32)[None, :], (8, 1))
    y = pl.pallas_call(
        _roll_probe_kernel,
        out_shape=jax.ShapeDtypeStruct((8, 256), jnp.float32),
        in_specs=[pl.BlockSpec(memory_space=pltpu.MemorySpace.VMEM)],
        out_specs=pl.BlockSpec(memory_space=pltpu.MemorySpace.VMEM),
    )(x)
    # jnp.roll(x, 1) puts x[...,0]==0 at index 1.
    return bool(jax.device_get(y)[0, 1] == 0.0)


def _tap_offsets(k):
    """Flattened-canvas linear offsets for every tap of a k^3 conv."""
    p = (k - 1) // 2
    offs = []
    for kd in range(k):
        for kh in range(k):
            for kw in range(k):
                offs.append((kd - p) * CANVAS * CANVAS + (kh - p) * CANVAS + (kw - p))
    return offs


def _tap_shifts(k, roll_matches_jnp):
    """Per-tap lane-roll amounts so rolled[ci, o] == act[ci, o + linear_offset]."""
    return tuple(((-off) if roll_matches_jnp else off) % SC_PAD
                 for off in _tap_offsets(k))


# ---------------------------------------------------------------------------
# Fused kernel: layer 1 as a single MXU matmul over precomputed patches, then
# two tap-wise convs (roll -> small matmul -> accumulate), bias + ReLU + halo
# re-zeroing after each layer.  Channels on sublanes, spatial volume on lanes.
# ---------------------------------------------------------------------------
def _fused_conv_kernel(p_ref, m_ref, w1_ref, b1_ref, w2_ref, b2_ref,
                       w3_ref, b3_ref, o_ref, *, shifts23):
    # p_ref : (K1_PAD, SC_PAD)     layer-1 im2col patches (rows 27..31 zero)
    # m_ref : (1, SC_PAD)          1.0 at the 9^3 valid canvas positions, else 0.0
    # w1_ref: (16, K1_PAD)         layer-1 weights, tap index on lanes
    # wN_ref: (k^3, Cout, Cin)     per-tap (Cout, Cin) weight matrices, N=2,3
    # bN_ref: (Cout, 1)
    # o_ref : (DECODED_DIM, SC_PAD)
    mask = m_ref[...]

    # ---- layer 1: one lane-dense MXU matmul (Cin=1 folded into the 27 taps).
    acc = jnp.dot(w1_ref[...], p_ref[...], preferred_element_type=jnp.float32)
    act = jnp.maximum(acc + b1_ref[...], 0.0) * mask

    # ---- layers 2 & 3: tap-wise roll (XLU) + (Cout,Cin)@(Cin,S) matmul (MXU).
    for w_ref, b_ref, layer_shifts in zip((w2_ref, w3_ref),
                                          (b2_ref, b3_ref),
                                          shifts23):
        cout = w_ref.shape[1]
        acc = jnp.zeros((cout, SC_PAD), jnp.float32)
        for t, sh in enumerate(layer_shifts):
            xs = act if sh == 0 else pltpu.roll(act, shift=sh, axis=1)
            acc = acc + jnp.dot(w_ref[t], xs, preferred_element_type=jnp.float32)
        # bias + ReLU, then force the zero halo the next layer's taps rely on.
        act = jnp.maximum(acc + b_ref[...], 0.0) * mask
    o_ref[...] = act


# ---------------------------------------------------------------------------
# Host-side (one-time, tiny) preparation helpers.
# ---------------------------------------------------------------------------
def _prep_layer1(w, b):
    """(3,3,3,1,16) DHWIO -> (16, K1_PAD) tap-major weights + (16,1) bias."""
    cout = w.shape[4]
    wt = jnp.transpose(w.reshape(K1_TAPS, cout), (1, 0))          # (16, 27)
    wt = jnp.pad(wt, ((0, 0), (0, K1_PAD - K1_TAPS)))             # (16, 32)
    return wt, b.reshape(cout, 1)


def _prep_tapwise(w, b):
    """(k,k,k,Cin,Cout) DHWIO -> (k^3, Cout, Cin) per-tap matrices + (Cout,1)."""
    k, cin, cout = w.shape[0], w.shape[3], w.shape[4]
    wt = jnp.transpose(w, (0, 1, 2, 4, 3)).reshape(k * k * k, cout, cin)
    return wt, b.reshape(cout, 1)


def _valid_mask():
    m = jnp.pad(jnp.ones((SIZE, SIZE, SIZE), jnp.float32), PAD)   # (13,13,13)
    return jnp.pad(m.reshape(1, SC), ((0, 0), (0, SC_PAD - SC)))  # (1, 2304)


def _input_patches(grid):
    """Layer-1 im2col: (K1_PAD, SC_PAD); patches[t, o] = canvas[o + off_t]."""
    flat = jnp.pad(grid.astype(jnp.float32), PAD).reshape(SC)     # (2197,)
    flat = jnp.pad(flat, (0, SC_PAD - SC))                        # (2304,)
    rows = [jnp.roll(flat, -off) for off in _tap_offsets(3)]
    p = jnp.stack(rows, axis=0)                                   # (27, 2304)
    return jnp.pad(p, ((0, K1_PAD - K1_TAPS), (0, 0)))            # (32, 2304)


def make_forward(params):
    roll_jnp = _roll_matches_jnp()
    shifts23 = (_tap_shifts(5, roll_jnp), _tap_shifts(3, roll_jnp))
    kernel = functools.partial(_fused_conv_kernel, shifts23=shifts23)

    (w1, b1, _, _), (w2, b2, _, _), (w3, b3, _, _) = params
    w1e, b1e = _prep_layer1(w1, b1)
    w2e, b2e = _prep_tapwise(w2, b2)
    w3e, b3e = _prep_tapwise(w3, b3)
    mask = _valid_mask()

    fused = pl.pallas_call(
        kernel,
        out_shape=jax.ShapeDtypeStruct((DECODED_DIM, SC_PAD), jnp.float32),
        in_specs=[pl.BlockSpec(memory_space=pltpu.MemorySpace.VMEM)
                  for _ in range(8)],
        out_specs=pl.BlockSpec(memory_space=pltpu.MemorySpace.VMEM),
        compiler_params=pltpu.CompilerParams(vmem_limit_bytes=16 << 20),
    )

    def forward(grid):
        p = _input_patches(grid)                                  # tiny XLA glue
        out = fused(p, mask, w1e, b1e, w2e, b2e, w3e, b3e)        # (32, 2304)
        y = out[:, :SC].reshape(DECODED_DIM, CANVAS, CANVAS, CANVAS)
        y = y[:, PAD:PAD + SIZE, PAD:PAD + SIZE, PAD:PAD + SIZE]  # (C, D, H, W)
        # PyTorch: layer1(inp).squeeze(0).transpose(0, 3) -> (W, D, H, C)
        return jnp.transpose(y, (3, 1, 2, 0))

    return jax.jit(forward)


# ---------------------------------------------------------------------------
# Model parameters (same synthetic init / layout as before).
# ---------------------------------------------------------------------------
def init_params(key):
    # Conv3d(1,16,k=3,p=1) -> Conv3d(16,16,k=5,p=2) -> Conv3d(16,DECODED_DIM,k=3,p=1)
    specs = [(1, 16, 3, 1), (16, 16, 5, 2), (16, DECODED_DIM, 3, 1)]
    params = []
    for i, (cin, cout, k, pad) in enumerate(specs):
        kw_key, kb_key = jax.random.split(jax.random.fold_in(key, i))
        fan_in = cin * k * k * k
        scale = 1.0 / jnp.sqrt(jnp.float32(fan_in))
        w = jax.random.uniform(kw_key, (k, k, k, cin, cout), jnp.float32, -scale, scale)
        b = jax.random.uniform(kb_key, (cout,), jnp.float32, -scale, scale)
        params.append((w, b, k, pad))
    return params


# Pure-JAX reference (lax.conv) for correctness check.
def _reference_forward(grid, params):
    x = grid[None, ..., None]  # NDHWC
    for (w, b, _k, pad) in params:
        dn = lax.conv_dimension_numbers(x.shape, w.shape, ('NDHWC', 'DHWIO', 'NDHWC'))
        x = lax.conv_general_dilated(x, w, window_strides=(1, 1, 1),
                                     padding=[(pad, pad)] * 3, dimension_numbers=dn)
        x = jnp.maximum(x + b, 0.0)
    return jnp.transpose(x[0], (2, 0, 1, 3))  # (W, D, H, C)


if __name__ == "__main__":
    key = jax.random.PRNGKey(0)
    pkey, xkey = jax.random.split(key)
    params = init_params(pkey)

    # The sudoku grid the module operates on: (size, size, size) = (9, 9, 9)
    grid = jax.random.normal(xkey, (SIZE, SIZE, SIZE), jnp.float32)

    forward = make_forward(params)
    out = jax.block_until_ready(forward(grid))
    assert out.shape == (SIZE, SIZE, SIZE, DECODED_DIM), out.shape

    ref = _reference_forward(grid, params)
    assert jnp.allclose(out, ref, atol=1e-4, rtol=1e-4)

    print("KERNEL_OK")
</pallas_src>

<mosaic_0001>
module attributes {stable_mosaic.version = 11 : i64} {
  func.func @_roll_probe_kernel(%arg0: memref<8x256xf32, #tpu.memory_space<vmem>>, %arg1: memref<8x256xf32, #tpu.memory_space<vmem>>) attributes {dimension_semantics = [], scalar_prefetch = 0 : i64, scratch_operands = 0 : i64, tpu.core_type = #tpu.core_type<tc>} {
    %c0 = arith.constant 0 : index
    %c0_0 = arith.constant 0 : index
    %0 = vector.load %arg0[%c0, %c0_0] : memref<8x256xf32, #tpu.memory_space<vmem>>, vector<8x256xf32>
    %c1_i32 = arith.constant 1 : i32
    %1 = tpu.dynamic_rotate %0 by %c1_i32 dim 1 : vector<8x256xf32>, i32 -> vector<8x256xf32>
    %c0_1 = arith.constant 0 : index
    %c0_2 = arith.constant 0 : index
    %2 = vector.load %arg1[%c0_1, %c0_2] : memref<8x256xf32, #tpu.memory_space<vmem>>, vector<8x256xf32>
    tpu.vector_store %arg1[%c0_1, %c0_2], %1 {strides = array<i32>} : memref<8x256xf32, #tpu.memory_space<vmem>>, vector<8x256xf32>,
    return
  }
}

</mosaic_0001>

<llo_original>
// kernel: tpu_custom_call.1
$region0: #{tpu_custom_call.1}
  #allocation0 [shape = 'u32[]', space=smem, size = 0x4, offset = 0x4, fixed_abs, tag = 'smem constant byte address 0x4 - core index']
  #allocation1 [shape = 'u32[144,128]{1,0:T(1,128)}', space=vmem, size = 0x12000, scoped, tag = 'internal scratch']
  %s0 = inlined_call_operand.hbm [shape: f32[8,256], index: 0, kind: input, shape index: {}]
  %s1 = inlined_call_operand.hbm [shape: f32[8,256], index: 1, kind: output, shape index: {}]
  %s2 = sld [smem:[#allocation0]]
  $region18: #{tpu_custom_call.1} parent=0
    _
  %s4 = ssub.s32 1, %s2
  %s5 = scalar_select 0, %s4, %s2
  $region1: #{tpu_custom_call.1} parent=0
    #allocation2 [shape = 'u8[8192]{0}', space=vmem, size = 0x2000, scoped, tag = 'input window, operand 0, single buffered']
    #allocation3 [shape = 's32[1]{0}', space=sflag, size = 0x4, scoped, tag = 'scoped memory for tpu_custom_call.1']
    #allocation4 [shape = 's32[1]{0}', space=sflag, size = 0x4, scoped, tag = 'scoped memory for tpu_custom_call.1']
    #allocation5 [shape = 'u8[8192]{0}', space=vmem, size = 0x2000, scoped, tag = 'output window, operand 0, single buffered']
    %6 = vsyncpa [#allocation3], 0
    %7 = vsyncpa [#allocation4], 0
    // Predicated region
    $region2: #{tpu_custom_call.1} parent=1 // pred_check
      _
    $region3: #{tpu_custom_call.1} parent=1 // pred_check_branch
      %9 = sbr.rel (0) target = $region5
    $region4: #{tpu_custom_call.1} parent=1 // pred_region
      %s11 = ssub.s32 256, 256
      %12 = vsyncadd [#allocation3], %s11
      %s14 = sshll.u32 [#allocation2], 4
      %s15 = int_to_ptr.vmem [resolvable:$true] %s14
      %17 = dma.hbm_to_vmem [thread:$0]  %s0, 256, %s15, [#allocation3]
    $region5: #{tpu_custom_call.1} parent=1 // pred_fallthru
      _
    // Predicated region
    $region6: #{tpu_custom_call.1} parent=1 // pred_check
      _
    $region7: #{tpu_custom_call.1} parent=1 // pred_check_branch
      %19 = sbr.rel (0) target = $region9
    $region8: #{tpu_custom_call.1} parent=1 // pred_region
      %20 = dma.done [#allocation3], 256
    $region9: #{tpu_custom_call.1} parent=1 // pred_fallthru
      _
    %v21 = vld [vmem:[#allocation2] sm:$0xff]
    %v22 = vld [vmem:[#allocation2 + $0x8] sm:$0xff]
    %23 = vrot.lane.b32.xlu0 %v21, 1
    %v24 = vpop.permute.xlu0 %23
    %25 = vrot.lane.b32.xlu0 %v22, 1
    %v26 = vpop.permute.xlu0 %25
    %v27 = vlaneseq
    %v28 = vand.u32 %v27, 127
    %vm29 = vcmp.lt.s32.totalorder %v28, 1
    %v30 = vsel %vm29, %v24, %v26
    %v31 = vsel %vm29, %v26, %v24
    %32 = vst [vmem:[#allocation5] sm:$0xff] %v31
    %33 = vst [vmem:[#allocation5 + $0x8] sm:$0xff] %v30
    // Predicated region
    $region10: #{tpu_custom_call.1} parent=1 // pred_check
      _
    $region11: #{tpu_custom_call.1} parent=1 // pred_check_branch
      %35 = sbr.rel (0) target = $region13
    $region12: #{tpu_custom_call.1} parent=1 // pred_region
      %s37 = ssub.s32 256, 256
      %38 = vsyncadd [#allocation4], %s37
      %s40 = sshll.u32 [#allocation5], 4
      %s41 = int_to_ptr.vmem [resolvable:$true] %s40
      %43 = dma.vmem_to_hbm [thread:$0]  %s41, 256, %s1, [#allocation4]
    $region13: #{tpu_custom_call.1} parent=1 // pred_fallthru
      _
    // Predicated region
    $region14: #{tpu_custom_call.1} parent=1 // pred_check
      _
    $region15: #{tpu_custom_call.1} parent=1 // pred_check_branch
      %45 = sbr.rel (0) target = $region17
    $region16: #{tpu_custom_call.1} parent=1 // pred_region
      %46 = dma.done [#allocation4], 256
    $region17: #{tpu_custom_call.1} parent=1 // pred_fallthru
      _
    %47 = vsyncpa [#allocation3], 1
    %48 = vsyncpa [#allocation4], 1

</llo_original>
